<compile_context>
chip_gen: v7x
topology: tpu7x:2x2x1
jax: 0.10.0
libtpu: 0.0.40
codegen_flags: <defaults>
</compile_context>

<pallas_src>
from typing import Dict, Iterable, Callable

import jax
import jax.numpy as jnp
from jax.experimental import pallas as pl
from jax.experimental.pallas import tpu as pltpu


def _round_up(x: int, m: int) -> int:
    return ((x + m - 1) // m) * m


# ----------------------------------------------------------------------------
# Fused Pallas kernel: conv3x3+ReLU -> conv3x3+ReLU ("same" padding, stride 1)
# ----------------------------------------------------------------------------
def _build_fused_conv_call(B, Cin, H, W, C1, C2, compute_dtype, out_dtype):
    Hp, Wp = H + 2, W + 2                  # spatially zero-padded frame
    L = Hp * Wp                            # flat frame length per image
    Lout = _round_up(L, 128)               # per-image lane slot (lane-dense stores)
    N = B * Lout                           # matmul N: whole batch packed along lanes
    PADL = 128                             # shared lane halo at start of packed frame
    PADR = 128                             # ... and at the end
    Ltot = PADL + N + PADR
    assert PADL >= Wp + 1 and PADR >= Wp + 1, "halo must cover one padded row + 1"
    Cin_p = _round_up(Cin, 8)              # 8-row pieces -> tile-aligned sublane concat
    C1_p = _round_up(C1, 8)
    K1, K2 = 9 * Cin_p, 9 * C1_p
    # 3x3 tap offsets in the flat padded frame, row-major over (kh, kw)
    tap_offsets = tuple((kh - 1) * Wp + (kw - 1) for kh in range(3) for kw in range(3))

    def kernel(x_ref, w1_ref, b1_ref, w2_ref, b2_ref, mask_ref, f1_ref, o_ref, h1p_ref):
        # x_ref   : (Cin_p, Ltot) f32   batch packed along lanes at stride Lout
        # w*_ref  : (C1, K1) / (C2, K2) compute-dtype K-packed weights
        # b*_ref  : (C, 1)  f32
        # mask_ref: (1, N)  f32  1.0 at valid interior output positions, else 0.0
        # f1_ref  : (C1, N) out_dtype  captured conv1 feature (= what conv2 consumes)
        # o_ref   : (C2, N) out_dtype  conv2 output
        # h1p_ref : (C1_p, Ltot) f32 scratch: conv1 activation resident in VMEM
        mask = mask_ref[...]                                           # (1, N)

        # ---- conv1: K-stack the 9 shifted slices in VMEM, ONE MXU matmul --------
        stack1 = jnp.concatenate(
            [x_ref[:, PADL + d:PADL + d + N] for d in tap_offsets], axis=0)  # (K1, N)
        acc1 = jnp.dot(w1_ref[...], stack1.astype(compute_dtype),
                       preferred_element_type=jnp.float32)                    # (C1, N)
        h1 = jnp.maximum(acc1 + b1_ref[...], 0.0) * mask
        # Hook-visible feature: exactly the bf16 values conv2's MXU consumes.
        f1_ref[...] = h1.astype(f1_ref.dtype)

        # ---- conv1 activation stays resident in VMEM (no HBM round trip) --------
        # Zero only the halo lanes; the content region is fully overwritten below.
        # (Single grid step -> no pl.when gating needed.)
        h1p_ref[:, :PADL] = jnp.zeros((C1_p, PADL), jnp.float32)
        h1p_ref[:, PADL + N:] = jnp.zeros((C1_p, Ltot - PADL - N), jnp.float32)
        if C1_p > C1:  # static branch; keeps padded channel rows at exact zero
            h1p_ref[C1:, PADL:PADL + N] = jnp.zeros((C1_p - C1, N), jnp.float32)
        h1p_ref[0:C1, PADL:PADL + N] = h1

        # ---- conv2: same K-stacked single matmul --------------------------------
        stack2 = jnp.concatenate(
            [h1p_ref[:, PADL + d:PADL + d + N] for d in tap_offsets], axis=0)  # (K2, N)
        acc2 = jnp.dot(w2_ref[...], stack2.astype(compute_dtype),
                       preferred_element_type=jnp.float32)                      # (C2, N)
        o = jnp.maximum(acc2 + b2_ref[...], 0.0) * mask
        o_ref[...] = o.astype(o_ref.dtype)

    itemsize_c = jnp.dtype(compute_dtype).itemsize
    itemsize_o = jnp.dtype(out_dtype).itemsize
    flops = 2 * N * (K1 * C1 + K2 * C2)
    bytes_accessed = (Cin_p * Ltot * 4 + (C1 * K1 + C2 * K2) * itemsize_c
                      + (C1 + C2) * 4 + N * 4 + (C1 + C2) * N * itemsize_o)

    call = pl.pallas_call(
        kernel,
        out_shape=(jax.ShapeDtypeStruct((C1, N), out_dtype),
                   jax.ShapeDtypeStruct((C2, N), out_dtype)),
        grid_spec=pltpu.PrefetchScalarGridSpec(
            num_scalar_prefetch=0,
            grid=(1,),                         # whole batch in one block, one step
            in_specs=[
                pl.BlockSpec((Cin_p, Ltot), lambda i: (0, 0)),   # packed input frame
                pl.BlockSpec((C1, K1), lambda i: (0, 0)),        # conv1 K-packed weights
                pl.BlockSpec((C1, 1), lambda i: (0, 0)),         # conv1 bias
                pl.BlockSpec((C2, K2), lambda i: (0, 0)),        # conv2 K-packed weights
                pl.BlockSpec((C2, 1), lambda i: (0, 0)),         # conv2 bias
                pl.BlockSpec((1, N), lambda i: (0, 0)),          # interior mask
            ],
            out_specs=[
                pl.BlockSpec((C1, N), lambda i: (0, 0)),         # conv1 feature
                pl.BlockSpec((C2, N), lambda i: (0, 0)),         # conv2 output
            ],
            scratch_shapes=[pltpu.VMEM((C1_p, Ltot), jnp.float32)],
        ),
        compiler_params=pltpu.CompilerParams(
            dimension_semantics=("arbitrary",)),
        cost_estimate=pl.CostEstimate(
            flops=flops, transcendentals=0, bytes_accessed=bytes_accessed),
    )
    return call, (Hp, Wp, L, Lout, N, PADL, PADR, Ltot, Cin_p, C1_p)


def fused_conv3x3_relu_x2(x_nchw, w1, b1, w2, b2, *, compute_dtype=jnp.bfloat16):
    """Fused conv3x3(SAME)+ReLU -> conv3x3(SAME)+ReLU as one Pallas kernel.

    x: [B, Cin, H, W] NCHW; weights PyTorch-style [Cout, Cin, 3, 3]; biases [Cout].
    Returns (conv1_feature, conv2_output), both NCHW float32.  The conv1 feature is
    exactly the bf16 activation the fused conv2 consumed (widened to f32, which is exact).
    Note: MXU operands are bf16 (f32 accumulate) -> not bit-identical to an f32 conv.
    """
    B, Cin, H, W = x_nchw.shape
    C1, C2 = w1.shape[0], w2.shape[0]
    out_dtype = jnp.bfloat16                  # halve HBM writeback; widen on host
    call, (Hp, Wp, L, Lout, N, PADL, PADR, Ltot, Cin_p, C1_p) = _build_fused_conv_call(
        B, Cin, H, W, C1, C2, compute_dtype, out_dtype)

    # --- API-boundary layout plumbing (pads / reshapes only; all tiny) -----------
    xp = jnp.pad(x_nchw, ((0, 0), (0, 0), (1, 1), (1, 1)))            # (B,Cin,Hp,Wp)
    xflat = jnp.pad(xp.reshape(B, Cin, L),
                    ((0, 0), (0, Cin_p - Cin), (0, Lout - L)))         # (B,Cin_p,Lout)
    x_packed = xflat.transpose(1, 0, 2).reshape(Cin_p, N)              # lane j = b*Lout+p
    x_in = jnp.pad(x_packed, ((0, 0), (PADL, PADR))).astype(jnp.float32)

    def pack_taps(w, cout, cin, cin_p):
        # (Cout,Cin,3,3) -> (Cout, 9*cin_p); K index = tap*cin_p + channel, tap order
        # matches tap_offsets (row-major kh,kw); padded channels are zero.
        w = jnp.pad(w, ((0, 0), (0, cin_p - cin), (0, 0), (0, 0)))
        return (w.reshape(cout, cin_p, 9).transpose(0, 2, 1)
                 .reshape(cout, 9 * cin_p).astype(compute_dtype))

    w1_p = pack_taps(w1, C1, Cin, Cin_p)
    w2_p = pack_taps(w2, C2, C1, C1_p)
    b1_c = b1.reshape(C1, 1).astype(jnp.float32)
    b2_c = b2.reshape(C2, 1).astype(jnp.float32)

    pos = jnp.arange(Lout)
    hh, ww = pos // Wp, pos % Wp
    m = ((pos < L) & (hh >= 1) & (hh <= H) & (ww >= 1) & (ww <= W)).astype(jnp.float32)
    mask = jnp.tile(m, (B,))[None, :]                                  # (1, N)

    f1_flat, o_flat = call(x_in, w1_p, b1_c, w2_p, b2_c, mask)

    def to_nchw(a, c):                                                 # (c, N) -> NCHW f32
        a = a.astype(jnp.float32).reshape(c, B, Lout).transpose(1, 0, 2)
        return a[:, :, :L].reshape(B, c, Hp, Wp)[:, :, 1:1 + H, 1:1 + W]

    return to_nchw(f1_flat, C1), to_nchw(o_flat, C2)


# ----------------------------------------------------------------------------
# Synthetic wrapped "model" with named layers (stand-in for the nn.Module)
# ----------------------------------------------------------------------------
class TinyConvModel:
    """Synthetic stand-in for the wrapped nn.Module (e.g. a DETR backbone stem)."""
    # TODO(synk): generic nn.Module wrapping / register_forward_hook has no Pallas
    # equivalent; a fixed fused 2-conv model with explicit hook callbacks is used.

    def __init__(self, key, in_ch: int = 4, mid_ch: int = 8, out_ch: int = 8):
        k1, k2, k3, k4 = jax.random.split(key, 4)
        self.params = {
            "conv1": (0.1 * jax.random.normal(k1, (mid_ch, in_ch, 3, 3), jnp.float32),
                      0.01 * jax.random.normal(k2, (mid_ch,), jnp.float32)),
            "conv2": (0.1 * jax.random.normal(k3, (out_ch, mid_ch, 3, 3), jnp.float32),
                      0.01 * jax.random.normal(k4, (out_ch,), jnp.float32)),
        }
        self.layer_names = ["conv1", "conv2"]

    def __call__(self, x: jax.Array, hooks: Dict[str, Callable] = None) -> jax.Array:
        hooks = hooks or {}
        w1, b1 = self.params["conv1"]
        w2, b2 = self.params["conv2"]
        # conv1 -> conv2 run as a single fused Pallas kernel; the conv1 activation never
        # round-trips HBM, and the emitted conv1 feature is exactly what conv2 consumed.
        f1, out = fused_conv3x3_relu_x2(x, w1, b1, w2, b2)
        layer_outputs = {"conv1": f1, "conv2": out}
        for name in self.layer_names:
            if name in hooks:
                hooks[name](layer_outputs[name])
        return out


# ----------------------------------------------------------------------------
# FeatureExtractor: same semantics as the PyTorch module
# ----------------------------------------------------------------------------
class FeatureExtractor:
    def __init__(self, model: TinyConvModel, layers: Iterable[str]):
        self.model = model
        self.layers = list(layers)
        self._features: Dict[str, jax.Array] = {layer: jnp.empty((0,)) for layer in self.layers}
        for layer_id in self.layers:
            if layer_id not in model.layer_names:
                raise KeyError(layer_id)

    def save_outputs_hook(self, layer_id: str) -> Callable:
        def fn(output):
            self._features[layer_id] = output
        return fn

    def forward(self, x: jax.Array) -> jax.Array:
        hooks = {layer_id: self.save_outputs_hook(layer_id) for layer_id in self.layers}
        return self.model(x, hooks=hooks)

    __call__ = forward


# ----------------------------------------------------------------------------
# Reference (pure-JAX, f32) conv for correctness checking
# ----------------------------------------------------------------------------
def _ref_conv3x3_relu(x, weight, bias):
    y = jax.lax.conv_general_dilated(
        x, weight, window_strides=(1, 1), padding="SAME",
        dimension_numbers=("NCHW", "OIHW", "NCHW"))
    return jnp.maximum(y + bias[None, :, None, None], 0.0)


if __name__ == "__main__":
    key = jax.random.PRNGKey(0)
    k_model, k_x = jax.random.split(key)

    model = TinyConvModel(k_model, in_ch=4, mid_ch=8, out_ch=8)
    extractor = FeatureExtractor(model, layers=["conv1"])

    # NCHW input: batch=2, channels=4, spatial=16x16
    x = jax.random.normal(k_x, (2, 4, 16, 16), jnp.float32)

    out = extractor(x)
    out = jax.block_until_ready(out)
    feat = jax.block_until_ready(extractor._features["conv1"])

    # Cross-check fused Pallas conv stack against the f32 lax.conv reference.
    ref1 = _ref_conv3x3_relu(x, *model.params["conv1"])
    ref2 = _ref_conv3x3_relu(ref1, *model.params["conv2"])
    assert out.shape == (2, 8, 16, 16) and feat.shape == (2, 8, 16, 16)
    # bf16 MXU operands / bf16 writeback with f32 accumulation -> loose-ish tolerance.
    err1 = float(jnp.max(jnp.abs(feat - ref1)))
    err2 = float(jnp.max(jnp.abs(out - ref2)))
    assert jnp.allclose(feat, ref1, atol=3e-2, rtol=3e-2), err1
    assert jnp.allclose(out, ref2, atol=3e-2, rtol=3e-2), err2

    print("KERNEL_OK")
</pallas_src>

<mosaic_0001>
module attributes {stable_mosaic.version = 11 : i64} {
  func.func @kernel(%arg0: i32, %arg1: memref<8x1024xf32, #tpu.memory_space<vmem>>, %arg2: memref<8x72xbf16, #tpu.memory_space<vmem>>, %arg3: memref<8x1xf32, #tpu.memory_space<vmem>>, %arg4: memref<8x72xbf16, #tpu.memory_space<vmem>>, %arg5: memref<8x1xf32, #tpu.memory_space<vmem>>, %arg6: memref<1x768xf32, #tpu.memory_space<vmem>>, %arg7: memref<8x768xbf16, #tpu.memory_space<vmem>>, %arg8: memref<8x768xbf16, #tpu.memory_space<vmem>>, %arg9: memref<8x1024xf32, #tpu.memory_space<vmem>>) attributes {dimension_semantics = [#tpu.dimension_semantics<arbitrary>], iteration_bounds = array<i64: 1>, scalar_prefetch = 0 : i64, scratch_operands = 1 : i64, tpu.core_type = #tpu.core_type<tc>, window_params = [{pipeline_mode = #tpu.pipeline_mode<synchronous>, transform_indices = @transform_0, window_bounds = array<i64: 8, 1024>}, {pipeline_mode = #tpu.pipeline_mode<synchronous>, transform_indices = @transform_1, window_bounds = array<i64: 8, 72>}, {pipeline_mode = #tpu.pipeline_mode<synchronous>, transform_indices = @transform_2, window_bounds = array<i64: 8, 1>}, {pipeline_mode = #tpu.pipeline_mode<synchronous>, transform_indices = @transform_3, window_bounds = array<i64: 8, 72>}, {pipeline_mode = #tpu.pipeline_mode<synchronous>, transform_indices = @transform_4, window_bounds = array<i64: 8, 1>}, {pipeline_mode = #tpu.pipeline_mode<synchronous>, transform_indices = @transform_5, window_bounds = array<i64: 1, 768>}, {pipeline_mode = #tpu.pipeline_mode<synchronous>, transform_indices = @transform_6, window_bounds = array<i64: 8, 768>}, {pipeline_mode = #tpu.pipeline_mode<synchronous>, transform_indices = @transform_7, window_bounds = array<i64: 8, 768>}]} {
    %c0 = arith.constant 0 : index
    %c0_0 = arith.constant 0 : index
    %0 = vector.load %arg6[%c0, %c0_0] : memref<1x768xf32, #tpu.memory_space<vmem>>, vector<1x768xf32>
    %c0_1 = arith.constant 0 : index
    %c109 = arith.constant 109 : index
    %1 = vector.load %arg1[%c0_1, %c109] : memref<8x1024xf32, #tpu.memory_space<vmem>>, vector<8x768xf32>
    %c0_2 = arith.constant 0 : index
    %c110 = arith.constant 110 : index
    %2 = vector.load %arg1[%c0_2, %c110] : memref<8x1024xf32, #tpu.memory_space<vmem>>, vector<8x768xf32>
    %c0_3 = arith.constant 0 : index
    %c111 = arith.constant 111 : index
    %3 = vector.load %arg1[%c0_3, %c111] : memref<8x1024xf32, #tpu.memory_space<vmem>>, vector<8x768xf32>
    %c0_4 = arith.constant 0 : index
    %c127 = arith.constant 127 : index
    %4 = vector.load %arg1[%c0_4, %c127] : memref<8x1024xf32, #tpu.memory_space<vmem>>, vector<8x768xf32>
    %c0_5 = arith.constant 0 : index
    %c128 = arith.constant 128 : index
    %5 = vector.load %arg1[%c0_5, %c128] : memref<8x1024xf32, #tpu.memory_space<vmem>>, vector<8x768xf32>
    %c0_6 = arith.constant 0 : index
    %c129 = arith.constant 129 : index
    %6 = vector.load %arg1[%c0_6, %c129] : memref<8x1024xf32, #tpu.memory_space<vmem>>, vector<8x768xf32>
    %c0_7 = arith.constant 0 : index
    %c145 = arith.constant 145 : index
    %7 = vector.load %arg1[%c0_7, %c145] : memref<8x1024xf32, #tpu.memory_space<vmem>>, vector<8x768xf32>
    %c0_8 = arith.constant 0 : index
    %c146 = arith.constant 146 : index
    %8 = vector.load %arg1[%c0_8, %c146] : memref<8x1024xf32, #tpu.memory_space<vmem>>, vector<8x768xf32>
    %c0_9 = arith.constant 0 : index
    %c147 = arith.constant 147 : index
    %9 = vector.load %arg1[%c0_9, %c147] : memref<8x1024xf32, #tpu.memory_space<vmem>>, vector<8x768xf32>
    %10 = tpu.concatenate %1, %2, %3, %4, %5, %6, %7, %8, %9 in 0 : vector<8x768xf32>, vector<8x768xf32>, vector<8x768xf32>, vector<8x768xf32>, vector<8x768xf32>, vector<8x768xf32>, vector<8x768xf32>, vector<8x768xf32>, vector<8x768xf32> -> vector<72x768xf32>
    %c0_10 = arith.constant 0 : index
    %c0_11 = arith.constant 0 : index
    %11 = vector.load %arg2[%c0_10, %c0_11] : memref<8x72xbf16, #tpu.memory_space<vmem>>, vector<8x72xbf16>
    %12 = arith.truncf %10 : vector<72x768xf32> to vector<72x768xbf16>
    %cst = arith.constant dense<0.000000e+00> : vector<8x768xf32>
    %13 = tpu.matmul %11, %12, %cst {dimension_numbers = #tpu.dot_dimension_numbers<[1], [0], [0], [1], [0, 0, 1, 1], [], []>} : vector<8x72xbf16>, vector<72x768xbf16>, vector<8x768xf32> -> vector<8x768xf32>
    %c0_12 = arith.constant 0 : index
    %c0_13 = arith.constant 0 : index
    %14 = vector.load %arg3[%c0_12, %c0_13] : memref<8x1xf32, #tpu.memory_space<vmem>>, vector<8x1xf32>
    %15 = vector.broadcast %14 : vector<8x1xf32> to vector<8x768xf32>
    %16 = arith.addf %13, %15 : vector<8x768xf32>
    %cst_14 = arith.constant 0.000000e+00 : f32
    %17 = vector.broadcast %cst_14 : f32 to vector<8x768xf32>
    %18 = arith.maximumf %16, %17 : vector<8x768xf32>
    %19 = vector.broadcast %0 : vector<1x768xf32> to vector<8x768xf32>
    %20 = arith.mulf %18, %19 : vector<8x768xf32>
    %21 = arith.truncf %20 : vector<8x768xf32> to vector<8x768xbf16>
    %c0_15 = arith.constant 0 : index
    %c0_16 = arith.constant 0 : index
    %22 = vector.load %arg7[%c0_15, %c0_16] : memref<8x768xbf16, #tpu.memory_space<vmem>>, vector<8x768xbf16>
    tpu.vector_store %arg7[%c0_15, %c0_16], %21 {strides = array<i32>} : memref<8x768xbf16, #tpu.memory_space<vmem>>, vector<8x768xbf16>,
    %cst_17 = arith.constant 0.000000e+00 : f32
    %23 = vector.broadcast %cst_17 : f32 to vector<8x128xf32>
    %c0_18 = arith.constant 0 : index
    %c0_19 = arith.constant 0 : index
    %24 = vector.load %arg9[%c0_18, %c0_19] : memref<8x1024xf32, #tpu.memory_space<vmem>>, vector<8x128xf32>
    tpu.vector_store %arg9[%c0_18, %c0_19], %23 {strides = array<i32>} : memref<8x1024xf32, #tpu.memory_space<vmem>>, vector<8x128xf32>,
    %cst_20 = arith.constant 0.000000e+00 : f32
    %25 = vector.broadcast %cst_20 : f32 to vector<8x128xf32>
    %c0_21 = arith.constant 0 : index
    %c896 = arith.constant 896 : index
    %26 = vector.load %arg9[%c0_21, %c896] : memref<8x1024xf32, #tpu.memory_space<vmem>>, vector<8x128xf32>
    tpu.vector_store %arg9[%c0_21, %c896], %25 {strides = array<i32>} : memref<8x1024xf32, #tpu.memory_space<vmem>>, vector<8x128xf32>,
    %c0_22 = arith.constant 0 : index
    %c128_23 = arith.constant 128 : index
    %27 = vector.load %arg9[%c0_22, %c128_23] : memref<8x1024xf32, #tpu.memory_space<vmem>>, vector<8x768xf32>
    tpu.vector_store %arg9[%c0_22, %c128_23], %20 {strides = array<i32>} : memref<8x1024xf32, #tpu.memory_space<vmem>>, vector<8x768xf32>,
    %c0_24 = arith.constant 0 : index
    %c109_25 = arith.constant 109 : index
    %28 = vector.load %arg9[%c0_24, %c109_25] : memref<8x1024xf32, #tpu.memory_space<vmem>>, vector<8x768xf32>
    %c0_26 = arith.constant 0 : index
    %c110_27 = arith.constant 110 : index
    %29 = vector.load %arg9[%c0_26, %c110_27] : memref<8x1024xf32, #tpu.memory_space<vmem>>, vector<8x768xf32>
    %c0_28 = arith.constant 0 : index
    %c111_29 = arith.constant 111 : index
    %30 = vector.load %arg9[%c0_28, %c111_29] : memref<8x1024xf32, #tpu.memory_space<vmem>>, vector<8x768xf32>
    %c0_30 = arith.constant 0 : index
    %c127_31 = arith.constant 127 : index
    %31 = vector.load %arg9[%c0_30, %c127_31] : memref<8x1024xf32, #tpu.memory_space<vmem>>, vector<8x768xf32>
    %c0_32 = arith.constant 0 : index
    %c128_33 = arith.constant 128 : index
    %32 = vector.load %arg9[%c0_32, %c128_33] : memref<8x1024xf32, #tpu.memory_space<vmem>>, vector<8x768xf32>
    %c0_34 = arith.constant 0 : index
    %c129_35 = arith.constant 129 : index
    %33 = vector.load %arg9[%c0_34, %c129_35] : memref<8x1024xf32, #tpu.memory_space<vmem>>, vector<8x768xf32>
    %c0_36 = arith.constant 0 : index
    %c145_37 = arith.constant 145 : index
    %34 = vector.load %arg9[%c0_36, %c145_37] : memref<8x1024xf32, #tpu.memory_space<vmem>>, vector<8x768xf32>
    %c0_38 = arith.constant 0 : index
    %c146_39 = arith.constant 146 : index
    %35 = vector.load %arg9[%c0_38, %c146_39] : memref<8x1024xf32, #tpu.memory_space<vmem>>, vector<8x768xf32>
    %c0_40 = arith.constant 0 : index
    %c147_41 = arith.constant 147 : index
    %36 = vector.load %arg9[%c0_40, %c147_41] : memref<8x1024xf32, #tpu.memory_space<vmem>>, vector<8x768xf32>
    %37 = tpu.concatenate %28, %29, %30, %31, %32, %33, %34, %35, %36 in 0 : vector<8x768xf32>, vector<8x768xf32>, vector<8x768xf32>, vector<8x768xf32>, vector<8x768xf32>, vector<8x768xf32>, vector<8x768xf32>, vector<8x768xf32>, vector<8x768xf32> -> vector<72x768xf32>
    %c0_42 = arith.constant 0 : index
    %c0_43 = arith.constant 0 : index
    %38 = vector.load %arg4[%c0_42, %c0_43] : memref<8x72xbf16, #tpu.memory_space<vmem>>, vector<8x72xbf16>
    %39 = arith.truncf %37 : vector<72x768xf32> to vector<72x768xbf16>
    %cst_44 = arith.constant dense<0.000000e+00> : vector<8x768xf32>
    %40 = tpu.matmul %38, %39, %cst_44 {dimension_numbers = #tpu.dot_dimension_numbers<[1], [0], [0], [1], [0, 0, 1, 1], [], []>} : vector<8x72xbf16>, vector<72x768xbf16>, vector<8x768xf32> -> vector<8x768xf32>
    %c0_45 = arith.constant 0 : index
    %c0_46 = arith.constant 0 : index
    %41 = vector.load %arg5[%c0_45, %c0_46] : memref<8x1xf32, #tpu.memory_space<vmem>>, vector<8x1xf32>
    %42 = vector.broadcast %41 : vector<8x1xf32> to vector<8x768xf32>
    %43 = arith.addf %40, %42 : vector<8x768xf32>
    %cst_47 = arith.constant 0.000000e+00 : f32
    %44 = vector.broadcast %cst_47 : f32 to vector<8x768xf32>
    %45 = arith.maximumf %43, %44 : vector<8x768xf32>
    %46 = vector.broadcast %0 : vector<1x768xf32> to vector<8x768xf32>
    %47 = arith.mulf %45, %46 : vector<8x768xf32>
    %48 = arith.truncf %47 : vector<8x768xf32> to vector<8x768xbf16>
    %c0_48 = arith.constant 0 : index
    %c0_49 = arith.constant 0 : index
    %49 = vector.load %arg8[%c0_48, %c0_49] : memref<8x768xbf16, #tpu.memory_space<vmem>>, vector<8x768xbf16>
    tpu.vector_store %arg8[%c0_48, %c0_49], %48 {strides = array<i32>} : memref<8x768xbf16, #tpu.memory_space<vmem>>, vector<8x768xbf16>,
    return
  }
  func.func @transform_0(%arg0: i32) -> (i32, i32) {
    %c0_i32 = arith.constant 0 : i32
    %c0_i32_0 = arith.constant 0 : i32
    %c0_i32_1 = arith.constant 0 : i32
    return %c0_i32, %c0_i32_0 : i32, i32
  }
  func.func @transform_1(%arg0: i32) -> (i32, i32) {
    %c0_i32 = arith.constant 0 : i32
    %c0_i32_0 = arith.constant 0 : i32
    %c0_i32_1 = arith.constant 0 : i32
    return %c0_i32, %c0_i32_0 : i32, i32
  }
  func.func @transform_2(%arg0: i32) -> (i32, i32) {
    %c0_i32 = arith.constant 0 : i32
    %c0_i32_0 = arith.constant 0 : i32
    %c0_i32_1 = arith.constant 0 : i32
    return %c0_i32, %c0_i32_0 : i32, i32
  }
  func.func @transform_3(%arg0: i32) -> (i32, i32) {
    %c0_i32 = arith.constant 0 : i32
    %c0_i32_0 = arith.constant 0 : i32
    %c0_i32_1 = arith.constant 0 : i32
    return %c0_i32, %c0_i32_0 : i32, i32
  }
  func.func @transform_4(%arg0: i32) -> (i32, i32) {
    %c0_i32 = arith.constant 0 : i32
    %c0_i32_0 = arith.constant 0 : i32
    %c0_i32_1 = arith.constant 0 : i32
    return %c0_i32, %c0_i32_0 : i32, i32
  }
  func.func @transform_5(%arg0: i32) -> (i32, i32) {
    %c0_i32 = arith.constant 0 : i32
    %c0_i32_0 = arith.constant 0 : i32
    %c0_i32_1 = arith.constant 0 : i32
    return %c0_i32, %c0_i32_0 : i32, i32
  }
  func.func @transform_6(%arg0: i32) -> (i32, i32) {
    %c0_i32 = arith.constant 0 : i32
    %c0_i32_0 = arith.constant 0 : i32
    %c0_i32_1 = arith.constant 0 : i32
    return %c0_i32, %c0_i32_0 : i32, i32
  }
  func.func @transform_7(%arg0: i32) -> (i32, i32) {
    %c0_i32 = arith.constant 0 : i32
    %c0_i32_0 = arith.constant 0 : i32
    %c0_i32_1 = arith.constant 0 : i32
    return %c0_i32, %c0_i32_0 : i32, i32
  }
}

</mosaic_0001>

<llo_original>
// kernel: tpu_custom_call.1
$region0: #{tpu_custom_call.1}
  #allocation0 [shape = 'u32[]', space=smem, size = 0x4, offset = 0x4, fixed_abs, tag = 'smem constant byte address 0x4 - core index']
  #allocation1 [shape = 'u32[144,128]{1,0:T(1,128)}', space=vmem, size = 0x12000, scoped, tag = 'internal scratch']
  #allocation2 [shape = 'f32[8,1024]{1,0:T(8,128)}', space=vmem, size = 0x8000, scoped, tag = 'scratch operand']
  %s0 = inlined_call_operand.hbm [shape: f32[8,1024], index: 0, kind: input, shape index: {}]
  %s1 = inlined_call_operand.vmem [shape: bf16[8,72], index: 1, kind: input, shape index: {}]
  %s2 = inlined_call_operand.vmem [shape: f32[8,1], index: 2, kind: input, shape index: {}]
  %s3 = inlined_call_operand.vmem [shape: bf16[8,72], index: 3, kind: input, shape index: {}]
  %s4 = inlined_call_operand.vmem [shape: f32[8,1], index: 4, kind: input, shape index: {}]
  %s5 = inlined_call_operand.vmem [shape: f32[1,768], index: 5, kind: input, shape index: {}]
  %s6 = inlined_call_operand.hbm [shape: bf16[8,768], index: 6, kind: output, shape index: {0}]
  %s7 = inlined_call_operand.hbm [shape: bf16[8,768], index: 7, kind: output, shape index: {1}]
  %8 = xla_tuple %s6, %s7
  %s9 = sld [smem:[#allocation0]]
  $region46: #{tpu_custom_call.1} parent=0
    _
  %s11 = ssub.s32 1, %s9
  %s12 = scalar_select 0, %s11, %s9
  $region1: #{tpu_custom_call.1} parent=0
    #allocation3 [shape = 'u8[32768]{0}', space=vmem, size = 0x8000, scoped, tag = 'input window, operand 0, single buffered']
    #allocation4 [shape = 's32[1]{0}', space=sflag, size = 0x4, scoped, tag = 'scoped memory for tpu_custom_call.1']
    #allocation5 [shape = 's32[1]{0}', space=sflag, size = 0x4, scoped, tag = 'scoped memory for tpu_custom_call.1']
    #allocation6 [shape = 'u8[12288]{0}', space=vmem, size = 0x3000, scoped, tag = 'output window, operand 0, single buffered']
    #allocation7 [shape = 'u8[12288]{0}', space=vmem, size = 0x3000, scoped, tag = 'output window, operand 1, single buffered']
    #allocation8 [shape = 's32[1]{0}', space=sflag, size = 0x4, scoped, tag = 'scoped memory for tpu_custom_call.1']
    %13 = vsyncpa [#allocation4], 0
    %14 = vsyncpa [#allocation5], 0
    %15 = vsyncpa [#allocation8], 0
    // Predicated region
    $region2: #{tpu_custom_call.1} parent=1 // pred_check
      _
    $region3: #{tpu_custom_call.1} parent=1 // pred_check_branch
      %17 = sbr.rel (0) target = $region5
    $region4: #{tpu_custom_call.1} parent=1 // pred_region
      %s19 = ssub.s32 1024, 1024
      %20 = vsyncadd [#allocation4], %s19
      %s22 = sshll.u32 [#allocation3], 4
      %s23 = int_to_ptr.vmem [resolvable:$true] %s22
      %25 = dma.hbm_to_vmem [thread:$0]  %s0, 1024, %s23, [#allocation4]
    $region5: #{tpu_custom_call.1} parent=1 // pred_fallthru
      _
    // Predicated region
    $region6: #{tpu_custom_call.1} parent=1 // pred_check
      _
    $region7: #{tpu_custom_call.1} parent=1 // pred_check_branch
      %27 = sbr.rel (0) target = $region9
    $region8: #{tpu_custom_call.1} parent=1 // pred_region
      _
    $region9: #{tpu_custom_call.1} parent=1 // pred_fallthru
      _
    // Predicated region
    $region10: #{tpu_custom_call.1} parent=1 // pred_check
      _
    $region11: #{tpu_custom_call.1} parent=1 // pred_check_branch
      %29 = sbr.rel (0) target = $region13
    $region12: #{tpu_custom_call.1} parent=1 // pred_region
      _
    $region13: #{tpu_custom_call.1} parent=1 // pred_fallthru
      _
    // Predicated region
    $region14: #{tpu_custom_call.1} parent=1 // pred_check
      _
    $region15: #{tpu_custom_call.1} parent=1 // pred_check_branch
      %31 = sbr.rel (0) target = $region17
    $region16: #{tpu_custom_call.1} parent=1 // pred_region
      _
    $region17: #{tpu_custom_call.1} parent=1 // pred_fallthru
      _
    // Predicated region
    $region18: #{tpu_custom_call.1} parent=1 // pred_check
      _
    $region19: #{tpu_custom_call.1} parent=1 // pred_check_branch
      %33 = sbr.rel (0) target = $region21
    $region20: #{tpu_custom_call.1} parent=1 // pred_region
      _
    $region21: #{tpu_custom_call.1} parent=1 // pred_fallthru
      _
    // Predicated region
    $region22: #{tpu_custom_call.1} parent=1 // pred_check
      _
    $region23: #{tpu_custom_call.1} parent=1 // pred_check_branch
      %35 = sbr.rel (0) target = $region25
    $region24: #{tpu_custom_call.1} parent=1 // pred_region
      _
    $region25: #{tpu_custom_call.1} parent=1 // pred_fallthru
      _
    // Predicated region
    $region26: #{tpu_custom_call.1} parent=1 // pred_check
      _
    $region27: #{tpu_custom_call.1} parent=1 // pred_check_branch
      %37 = sbr.rel (0) target = $region29
    $region28: #{tpu_custom_call.1} parent=1 // pred_region
      %38 = dma.done [#allocation4], 1024
    $region29: #{tpu_custom_call.1} parent=1 // pred_fallthru
      _
    %v40 = vld [vmem:[%s5] sm:$0x3f]
    %v41 = vld [vmem:[#allocation3] sm:$0xff]
    %v42 = vld [vmem:[#allocation3 + $0x8] sm:$0xff]
    %v43 = vld [vmem:[#allocation3 + $0x10] sm:$0xff]
    %v44 = vld [vmem:[#allocation3 + $0x18] sm:$0xff]
    %v45 = vld [vmem:[#allocation3 + $0x20] sm:$0xff]
    %v46 = vld [vmem:[#allocation3 + $0x28] sm:$0xff]
    %v47 = vld [vmem:[#allocation3 + $0x30] sm:$0xff]
    %v48 = vld [vmem:[#allocation3 + $0x8] sm:$0xff]
    %v49 = vld [vmem:[#allocation3 + $0x10] sm:$0xff]
    %v50 = vld [vmem:[#allocation3 + $0x18] sm:$0xff]
    %v51 = vld [vmem:[#allocation3 + $0x20] sm:$0xff]
    %v52 = vld [vmem:[#allocation3 + $0x28] sm:$0xff]
    %v53 = vld [vmem:[#allocation3 + $0x30] sm:$0xff]
    %v54 = vld [vmem:[#allocation3 + $0x38] sm:$0xff]
    %62 = vrot.lane.b32.xlu0 %v41, 127
    %v63 = vpop.permute.xlu0 %62
    %64 = vrot.lane.b32.xlu0 %v42, 127
    %v65 = vpop.permute.xlu0 %64
    %66 = vrot.lane.b32.xlu0 %v43, 127
    %v67 = vpop.permute.xlu0 %66
    %68 = vrot.lane.b32.xlu0 %v44, 127
    %v69 = vpop.permute.xlu0 %68
    %70 = vrot.lane.b32.xlu0 %v45, 127
    %v71 = vpop.permute.xlu0 %70
    %72 = vrot.lane.b32.xlu0 %v46, 127
    %v73 = vpop.permute.xlu0 %72
    %74 = vrot.lane.b32.xlu0 %v47, 127
    %v75 = vpop.permute.xlu0 %74
    %vm76 = vcmask 1039360
    %v77 = vsel %vm76, %v63, %v65
    %v78 = vsel %vm76, %v65, %v67
    %v79 = vsel %vm76, %v67, %v69
    %v80 = vsel %vm76, %v69, %v71
    %v81 = vsel %vm76, %v71, %v73
    %v82 = vsel %vm76, %v73, %v75
    %90 = vrot.lane.b32.xlu0 %v41, 126
    %v91 = vpop.permute.xlu0 %90
    %92 = vrot.lane.b32.xlu0 %v42, 126
    %v93 = vpop.permute.xlu0 %92
    %94 = vrot.lane.b32.xlu0 %v43, 126
    %v95 = vpop.permute.xlu0 %94
    %96 = vrot.lane.b32.xlu0 %v44, 126
    %v97 = vpop.permute.xlu0 %96
    %98 = vrot.lane.b32.xlu0 %v45, 126
    %v99 = vpop.permute.xlu0 %98
    %100 = vrot.lane.b32.xlu0 %v46, 126
    %v101 = vpop.permute.xlu0 %100
    %102 = vrot.lane.b32.xlu0 %v47, 126
    %v103 = vpop.permute.xlu0 %102
    %vm104 = vcmask 1031168
    %v105 = vsel %vm104, %v91, %v93
    %v106 = vsel %vm104, %v93, %v95
    %v107 = vsel %vm104, %v95, %v97
    %v108 = vsel %vm104, %v97, %v99
    %v109 = vsel %vm104, %v99, %v101
    %v110 = vsel %vm104, %v101, %v103
    %118 = vrot.lane.b32.xlu0 %v41, 110
    %v119 = vpop.permute.xlu0 %118
    %120 = vrot.lane.b32.xlu0 %v42, 110
    %v121 = vpop.permute.xlu0 %120
    %122 = vrot.lane.b32.xlu0 %v43, 110
    %v123 = vpop.permute.xlu0 %122
    %124 = vrot.lane.b32.xlu0 %v44, 110
    %v125 = vpop.permute.xlu0 %124
    %126 = vrot.lane.b32.xlu0 %v45, 110
    %v127 = vpop.permute.xlu0 %126
    %128 = vrot.lane.b32.xlu0 %v46, 110
    %v129 = vpop.permute.xlu0 %128
    %130 = vrot.lane.b32.xlu0 %v47, 110
    %v131 = vpop.permute.xlu0 %130
    %vm132 = vcmask 900096
    %v133 = vsel %vm132, %v119, %v121
    %v134 = vsel %vm132, %v121, %v123
    %v135 = vsel %vm132, %v123, %v125
    %v136 = vsel %vm132, %v125, %v127
    %v137 = vsel %vm132, %v127, %v129
    %v138 = vsel %vm132, %v129, %v131
    %146 = vrot.lane.b32.xlu0 %v42, 109
    %v147 = vpop.permute.xlu0 %146
    %148 = vrot.lane.b32.xlu0 %v43, 109
    %v149 = vpop.permute.xlu0 %148
    %150 = vrot.lane.b32.xlu0 %v44, 109
    %v151 = vpop.permute.xlu0 %150
    %152 = vrot.lane.b32.xlu0 %v45, 109
    %v153 = vpop.permute.xlu0 %152
    %154 = vrot.lane.b32.xlu0 %v46, 109
    %v155 = vpop.permute.xlu0 %154
    %156 = vrot.lane.b32.xlu0 %v47, 109
    %v157 = vpop.permute.xlu0 %156
    %vm158 = vcmask 891904
    %v159 = vsel %vm158, %v147, %v149
    %v160 = vsel %vm158, %v149, %v151
    %v161 = vsel %vm158, %v151, %v153
    %v162 = vsel %vm158, %v153, %v155
    %v163 = vsel %vm158, %v155, %v157
    %178 = vrot.lane.b32.xlu0 %v48, 108
    %v179 = vpop.permute.xlu0 %178
    %180 = vrot.lane.b32.xlu0 %v49, 108
    %v181 = vpop.permute.xlu0 %180
    %182 = vrot.lane.b32.xlu0 %v50, 108
    %v183 = vpop.permute.xlu0 %182
    %184 = vrot.lane.b32.xlu0 %v51, 108
    %v185 = vpop.permute.xlu0 %184
    %186 = vrot.lane.b32.xlu0 %v52, 108
    %v187 = vpop.permute.xlu0 %186
    %188 = vrot.lane.b32.xlu0 %v53, 108
    %v189 = vpop.permute.xlu0 %188
    %190 = vrot.lane.b32.xlu0 %v54, 108
    %v191 = vpop.permute.xlu0 %190
    %vm192 = vcmask 883712
    %v193 = vsel %vm192, %v179, %v181
    %v194 = vsel %vm192, %v181, %v183
    %v195 = vsel %vm192, %v183, %v185
    %v196 = vsel %vm192, %v185, %v187
    %v197 = vsel %vm192, %v187, %v189
    %v198 = vsel %vm192, %v189, %v191
    %206 = vrot.lane.b32.xlu0 %v48, 92
    %v207 = vpop.permute.xlu0 %206
    %208 = vrot.lane.b32.xlu0 %v49, 92
    %v209 = vpop.permute.xlu0 %208
    %210 = vrot.lane.b32.xlu0 %v50, 92
    %v211 = vpop.permute.xlu0 %210
    %212 = vrot.lane.b32.xlu0 %v51, 92
    %v213 = vpop.permute.xlu0 %212
    %214 = vrot.lane.b32.xlu0 %v52, 92
    %v215 = vpop.permute.xlu0 %214
    %216 = vrot.lane.b32.xlu0 %v53, 92
    %v217 = vpop.permute.xlu0 %216
    %218 = vrot.lane.b32.xlu0 %v54, 92
    %v219 = vpop.permute.xlu0 %218
    %vm220 = vcmask 752640
    %v221 = vsel %vm220, %v207, %v209
    %v222 = vsel %vm220, %v209, %v211
    %v223 = vsel %vm220, %v211, %v213
    %v224 = vsel %vm220, %v213, %v215
    %v225 = vsel %vm220, %v215, %v217
    %v226 = vsel %vm220, %v217, %v219
    %234 = vrot.lane.b32.xlu0 %v48, 91
    %v235 = vpop.permute.xlu0 %234
    %236 = vrot.lane.b32.xlu0 %v49, 91
    %v237 = vpop.permute.xlu0 %236
    %238 = vrot.lane.b32.xlu0 %v50, 91
    %v239 = vpop.permute.xlu0 %238
    %240 = vrot.lane.b32.xlu0 %v51, 91
    %v241 = vpop.permute.xlu0 %240
    %242 = vrot.lane.b32.xlu0 %v52, 91
    %v243 = vpop.permute.xlu0 %242
    %244 = vrot.lane.b32.xlu0 %v53, 91
    %v245 = vpop.permute.xlu0 %244
    %246 = vrot.lane.b32.xlu0 %v54, 91
    %v247 = vpop.permute.xlu0 %246
    %vm248 = vcmask 744448
    %v249 = vsel %vm248, %v235, %v237
    %v250 = vsel %vm248, %v237, %v239
    %v251 = vsel %vm248, %v239, %v241
    %v252 = vsel %vm248, %v241, %v243
    %v253 = vsel %vm248, %v243, %v245
    %v254 = vsel %vm248, %v245, %v247
    %262 = vrot.lane.b32.xlu0 %v48, 90
    %v263 = vpop.permute.xlu0 %262
    %264 = vrot.lane.b32.xlu0 %v49, 90
    %v265 = vpop.permute.xlu0 %264
    %266 = vrot.lane.b32.xlu0 %v50, 90
    %v267 = vpop.permute.xlu0 %266
    %268 = vrot.lane.b32.xlu0 %v51, 90
    %v269 = vpop.permute.xlu0 %268
    %270 = vrot.lane.b32.xlu0 %v52, 90
    %v271 = vpop.permute.xlu0 %270
    %272 = vrot.lane.b32.xlu0 %v53, 90
    %v273 = vpop.permute.xlu0 %272
    %274 = vrot.lane.b32.xlu0 %v54, 90
    %v275 = vpop.permute.xlu0 %274
    %vm276 = vcmask 736256
    %v277 = vsel %vm276, %v263, %v265
    %v278 = vsel %vm276, %v265, %v267
    %v279 = vsel %vm276, %v267, %v269
    %v280 = vsel %vm276, %v269, %v271
    %v281 = vsel %vm276, %v271, %v273
    %v282 = vsel %vm276, %v273, %v275
    %v290 = vld [vmem:[%s1] sm:$0xf]
    %v291 = vpack.c.bf16 %v77, %v41
    %v292 = vpack.c.bf16 %v78, %v42
    %v293 = vpack.c.bf16 %v79, %v43
    %v294 = vpack.c.bf16 %v80, %v44
    %v295 = vpack.c.bf16 %v81, %v45
    %v296 = vpack.c.bf16 %v82, %v46
    %v297 = vpack.c.bf16 %v75, %v47
    %v298 = vpack.c.bf16 %v133, %v105
    %v299 = vpack.c.bf16 %v134, %v106
    %v300 = vpack.c.bf16 %v135, %v107
    %v301 = vpack.c.bf16 %v136, %v108
    %v302 = vpack.c.bf16 %v137, %v109
    %v303 = vpack.c.bf16 %v138, %v110
    %v304 = vpack.c.bf16 %v131, %v103
    %v305 = vpack.c.bf16 %v179, %v147
    %v306 = vpack.c.bf16 %v193, %v159
    %v307 = vpack.c.bf16 %v194, %v160
    %v308 = vpack.c.bf16 %v195, %v161
    %v309 = vpack.c.bf16 %v196, %v162
    %v310 = vpack.c.bf16 %v197, %v163
    %v311 = vpack.c.bf16 %v198, %v157
    %v312 = vpack.c.bf16 %v235, %v207
    %v313 = vpack.c.bf16 %v249, %v221
    %v314 = vpack.c.bf16 %v250, %v222
    %v315 = vpack.c.bf16 %v251, %v223
    %v316 = vpack.c.bf16 %v252, %v224
    %v317 = vpack.c.bf16 %v253, %v225
    %v318 = vpack.c.bf16 %v254, %v226
    %v319 = vpack.c.bf16 %v263, %v263
    %v320 = vpack.c.bf16 %v277, %v277
    %v321 = vpack.c.bf16 %v278, %v278
    %v322 = vpack.c.bf16 %v279, %v279
    %v323 = vpack.c.bf16 %v280, %v280
    %v324 = vpack.c.bf16 %v281, %v281
    %v325 = vpack.c.bf16 %v282, %v282
    %v326 = vld [vmem:[%s2] sm:$0xff]
    %328 = vset.pattern.permute.xlu0 0
    %329 = vperm.xlu0 %328, %v326
    %v330 = vpop.permute.xlu0 %329
    %367 = vrot.lane.b32.xlu0 %v291, 19
    %v368 = vpop.permute.xlu0 %367
    %369 = vrot.lane.b32.xlu0 %v292, 19
    %v370 = vpop.permute.xlu0 %369
    %371 = vrot.lane.b32.xlu0 %v293, 19
    %v372 = vpop.permute.xlu0 %371
    %373 = vrot.lane.b32.xlu0 %v294, 19
    %v374 = vpop.permute.xlu0 %373
    %375 = vrot.lane.b32.xlu0 %v295, 19
    %v376 = vpop.permute.xlu0 %375
    %377 = vrot.lane.b32.xlu0 %v296, 19
    %v378 = vpop.permute.xlu0 %377
    %379 = vrot.lane.b32.xlu0 %v297, 19
    %v380 = vpop.permute.xlu0 %379
    %381 = vrot.lane.b32.xlu0 %v298, 19
    %v382 = vpop.permute.xlu0 %381
    %383 = vrot.lane.b32.xlu0 %v299, 19
    %v384 = vpop.permute.xlu0 %383
    %385 = vrot.lane.b32.xlu0 %v300, 19
    %v386 = vpop.permute.xlu0 %385
    %387 = vrot.lane.b32.xlu0 %v301, 19
    %v388 = vpop.permute.xlu0 %387
    %389 = vrot.lane.b32.xlu0 %v302, 19
    %v390 = vpop.permute.xlu0 %389
    %391 = vrot.lane.b32.xlu0 %v303, 19
    %v392 = vpop.permute.xlu0 %391
    %393 = vrot.lane.b32.xlu0 %v304, 19
    %v394 = vpop.permute.xlu0 %393
    %395 = vrot.lane.b32.xlu0 %v305, 19
    %v396 = vpop.permute.xlu0 %395
    %397 = vrot.lane.b32.xlu0 %v306, 19
    %v398 = vpop.permute.xlu0 %397
    %399 = vrot.lane.b32.xlu0 %v307, 19
    %v400 = vpop.permute.xlu0 %399
    %401 = vrot.lane.b32.xlu0 %v308, 19
    %v402 = vpop.permute.xlu0 %401
    %403 = vrot.lane.b32.xlu0 %v309, 19
    %v404 = vpop.permute.xlu0 %403
    %405 = vrot.lane.b32.xlu0 %v310, 19
    %v406 = vpop.permute.xlu0 %405
    %407 = vrot.lane.b32.xlu0 %v311, 19
    %v408 = vpop.permute.xlu0 %407
    %409 = vrot.lane.b32.xlu0 %v312, 19
    %v410 = vpop.permute.xlu0 %409
    %411 = vrot.lane.b32.xlu0 %v313, 19
    %v412 = vpop.permute.xlu0 %411
    %413 = vrot.lane.b32.xlu0 %v314, 19
    %v414 = vpop.permute.xlu0 %413
    %415 = vrot.lane.b32.xlu0 %v315, 19
    %v416 = vpop.permute.xlu0 %415
    %417 = vrot.lane.b32.xlu0 %v316, 19
    %v418 = vpop.permute.xlu0 %417
    %419 = vrot.lane.b32.xlu0 %v317, 19
    %v420 = vpop.permute.xlu0 %419
    %421 = vrot.lane.b32.xlu0 %v318, 19
    %v422 = vpop.permute.xlu0 %421
    %423 = vrot.lane.b32.xlu0 %v319, 19
    %v424 = vpop.permute.xlu0 %423
    %425 = vrot.lane.b32.xlu0 %v320, 19
    %v426 = vpop.permute.xlu0 %425
    %427 = vrot.lane.b32.xlu0 %v321, 19
    %v428 = vpop.permute.xlu0 %427
    %429 = vrot.lane.b32.xlu0 %v322, 19
    %v430 = vpop.permute.xlu0 %429
    %431 = vrot.lane.b32.xlu0 %v323, 19
    %v432 = vpop.permute.xlu0 %431
    %433 = vrot.lane.b32.xlu0 %v324, 19
    %v434 = vpop.permute.xlu0 %433
    %435 = vrot.lane.b32.xlu0 %v325, 19
    %v436 = vpop.permute.xlu0 %435
    %vm437 = vcmask 154624
    %v438 = vsel %vm437, %v368, %v370
    %v439 = vsel %vm437, %v370, %v372
    %v440 = vsel %vm437, %v372, %v374
    %v441 = vsel %vm437, %v374, %v376
    %v442 = vsel %vm437, %v376, %v378
    %v443 = vsel %vm437, %v378, %v380
    %v444 = vsel %vm437, %v382, %v384
    %v445 = vsel %vm437, %v384, %v386
    %v446 = vsel %vm437, %v386, %v388
    %v447 = vsel %vm437, %v388, %v390
    %v448 = vsel %vm437, %v390, %v392
    %v449 = vsel %vm437, %v392, %v394
    %v450 = vsel %vm437, %v396, %v398
    %v451 = vsel %vm437, %v398, %v400
    %v452 = vsel %vm437, %v400, %v402
    %v453 = vsel %vm437, %v402, %v404
    %v454 = vsel %vm437, %v404, %v406
    %v455 = vsel %vm437, %v406, %v408
    %v456 = vsel %vm437, %v410, %v412
    %v457 = vsel %vm437, %v412, %v414
    %v458 = vsel %vm437, %v414, %v416
    %v459 = vsel %vm437, %v416, %v418
    %v460 = vsel %vm437, %v418, %v420
    %v461 = vsel %vm437, %v420, %v422
    %v462 = vsel %vm437, %v424, %v426
    %v463 = vsel %vm437, %v426, %v428
    %v464 = vsel %vm437, %v428, %v430
    %v465 = vsel %vm437, %v430, %v432
    %v466 = vsel %vm437, %v432, %v434
    %v467 = vsel %vm437, %v434, %v436
    %vm492 = vcmask 588800
    %v494 = vsel %vm492, %v290, 0
    %vm496 = vcmask 1043456
    %v498 = vsel %vm496, %v462, 0
    %v501 = vsel %vm496, %v463, 0
    %v504 = vsel %vm496, %v464, 0
    %v507 = vsel %vm496, %v465, 0
    %v510 = vsel %vm496, %v466, 0
    %v513 = vsel %vm496, %v467, 0
    %515 = vmatprep.subr.bf16.mxu0 %v439
    %516 = vmatpush1.bf16.msra.mxu0 %v438
    %517 = vmatprep.subr.bf16.mxu0 %v445
    %518 = vmatpush1.bf16.msra.mxu0 %v444
    %519 = vmatprep.subr.bf16.mxu0 %v451
    %520 = vmatpush1.bf16.msra.mxu0 %v450
    %521 = vmatprep.subr.bf16.mxu0 %v457
    %522 = vmatpush1.bf16.msra.mxu0 %v456
    %523 = vmatprep.subr.bf16.mxu0 %v501
    %524 = vmatpush1.bf16.msra.mxu0 %v498
    %525 = vmatprep.subr.bf16.mxu0 0
    %526 = vmatpush1.bf16.msra.mxu0 0
    %527 = vmatprep.subr.bf16.mxu0 0
    %528 = vmatpush1.bf16.msra.mxu0 0
    %529 = vmatprep.subr.bf16.mxu0 0
    %530 = vmatpush1.bf16.msra.mxu0 0
    %531 = vmatprep.subr.bf16.mxu0 0
    %532 = vmatpush1.bf16.msra.mxu0 0
    %533 = vmatprep.subr.bf16.mxu0 0
    %534 = vmatpush1.bf16.msra.mxu0 0
    %535 = vmatprep.subr.bf16.mxu0 0
    %536 = vmatpush1.bf16.msra.mxu0 0
    %537 = vmatprep.subr.bf16.mxu0 0
    %538 = vmatpush1.bf16.msra.mxu0 0
    %539 = vmatprep.subr.bf16.mxu0 0
    %540 = vmatpush1.bf16.msra.mxu0 0
    %541 = vmatprep.subr.bf16.mxu0 0
    %542 = vmatpush1.bf16.msra.mxu0 0
    %543 = vmatprep.subr.bf16.mxu0 0
    %544 = vmatpush1.bf16.msra.mxu0 0
    %545 = vmatprep.subr.bf16.mxu0 0
    %546 = vmatpush1.bf16.msra.mxu0 0
    %547 = vmatprep.mubr.bf16.mxu0 0
    %548 = vmatmul.mubr.bf16.gmra.mrb[0].mxu0 %v494
    %v549 = vpop.f32.mrb[0].mxu0
    %v550 = vadd.f32 %v330, %v549
    %v551 = vpop.f32.mrb[0].mxu0
    %v552 = vadd.f32 %v330, %v551
    %v553 = vpop.f32.mrb[0].mxu0
    %v554 = vpop.f32.mrb[0].mxu0
    %555 = vdwg.mxu0
    %556 = vmatprep.subr.bf16.mxu0 %v441
    %557 = vmatpush1.bf16.msra.mxu0 %v440
    %558 = vmatprep.subr.bf16.mxu0 %v447
    %559 = vmatpush1.bf16.msra.mxu0 %v446
    %560 = vmatprep.subr.bf16.mxu0 %v453
    %561 = vmatpush1.bf16.msra.mxu0 %v452
    %562 = vmatprep.subr.bf16.mxu0 %v459
    %563 = vmatpush1.bf16.msra.mxu0 %v458
    %564 = vmatprep.subr.bf16.mxu0 %v507
    %565 = vmatpush1.bf16.msra.mxu0 %v504
    %566 = vmatprep.subr.bf16.mxu0 0
    %567 = vmatpush1.bf16.msra.mxu0 0
    %568 = vmatprep.subr.bf16.mxu0 0
    %569 = vmatpush1.bf16.msra.mxu0 0
    %570 = vmatprep.subr.bf16.mxu0 0
    %571 = vmatpush1.bf16.msra.mxu0 0
    %572 = vmatprep.subr.bf16.mxu0 0
    %573 = vmatpush1.bf16.msra.mxu0 0
    %574 = vmatprep.subr.bf16.mxu0 0
    %575 = vmatpush1.bf16.msra.mxu0 0
    %576 = vmatprep.subr.bf16.mxu0 0
    %577 = vmatpush1.bf16.msra.mxu0 0
    %578 = vmatprep.subr.bf16.mxu0 0
    %579 = vmatpush1.bf16.msra.mxu0 0
    %580 = vmatprep.subr.bf16.mxu0 0
    %581 = vmatpush1.bf16.msra.mxu0 0
    %582 = vmatprep.subr.bf16.mxu0 0
    %583 = vmatpush1.bf16.msra.mxu0 0
    %584 = vmatprep.subr.bf16.mxu0 0
    %585 = vmatpush1.bf16.msra.mxu0 0
    %586 = vmatprep.subr.bf16.mxu0 0
    %587 = vmatpush1.bf16.msra.mxu0 0
    %588 = vmatprep.mubr.bf16.mxu0 0
    %589 = vmatmul.mubr.bf16.gmra.mrb[0].mxu0 %v494
    %v590 = vpop.f32.mrb[0].mxu0
    %v591 = vadd.f32 %v330, %v590
    %v592 = vpop.f32.mrb[0].mxu0
    %v593 = vadd.f32 %v330, %v592
    %v594 = vpop.f32.mrb[0].mxu0
    %v595 = vpop.f32.mrb[0].mxu0
    %596 = vdwg.mxu0
    %597 = vmatprep.subr.bf16.mxu0 %v443
    %598 = vmatpush1.bf16.msra.mxu0 %v442
    %599 = vmatprep.subr.bf16.mxu0 %v449
    %600 = vmatpush1.bf16.msra.mxu0 %v448
    %601 = vmatprep.subr.bf16.mxu0 %v455
    %602 = vmatpush1.bf16.msra.mxu0 %v454
    %603 = vmatprep.subr.bf16.mxu0 %v461
    %604 = vmatpush1.bf16.msra.mxu0 %v460
    %605 = vmatprep.subr.bf16.mxu0 %v513
    %606 = vmatpush1.bf16.msra.mxu0 %v510
    %607 = vmatprep.subr.bf16.mxu0 0
    %608 = vmatpush1.bf16.msra.mxu0 0
    %609 = vmatprep.subr.bf16.mxu0 0
    %610 = vmatpush1.bf16.msra.mxu0 0
    %611 = vmatprep.subr.bf16.mxu0 0
    %612 = vmatpush1.bf16.msra.mxu0 0
    %613 = vmatprep.subr.bf16.mxu0 0
    %614 = vmatpush1.bf16.msra.mxu0 0
    %615 = vmatprep.subr.bf16.mxu0 0
    %616 = vmatpush1.bf16.msra.mxu0 0
    %617 = vmatprep.subr.bf16.mxu0 0
    %618 = vmatpush1.bf16.msra.mxu0 0
    %619 = vmatprep.subr.bf16.mxu0 0
    %620 = vmatpush1.bf16.msra.mxu0 0
    %621 = vmatprep.subr.bf16.mxu0 0
    %622 = vmatpush1.bf16.msra.mxu0 0
    %623 = vmatprep.subr.bf16.mxu0 0
    %624 = vmatpush1.bf16.msra.mxu0 0
    %625 = vmatprep.subr.bf16.mxu0 0
    %626 = vmatpush1.bf16.msra.mxu0 0
    %627 = vmatprep.subr.bf16.mxu0 0
    %628 = vmatpush1.bf16.msra.mxu0 0
    %629 = vmatprep.mubr.bf16.mxu0 0
    %630 = vmatmul.mubr.bf16.gmra.mrb[0].mxu0 %v494
    %v631 = vpop.f32.mrb[0].mxu0
    %v632 = vadd.f32 %v330, %v631
    %v633 = vpop.f32.mrb[0].mxu0
    %v634 = vadd.f32 %v330, %v633
    %v635 = vpop.f32.mrb[0].mxu0
    %v636 = vpop.f32.mrb[0].mxu0
    %637 = vdwg.mxu0
    %v638 = vmax.f32 %v550, 0.0
    %v639 = vmax.f32 %v552, 0.0
    %v640 = vmax.f32 %v591, 0.0
    %v641 = vmax.f32 %v593, 0.0
    %v642 = vmax.f32 %v632, 0.0
    %v643 = vmax.f32 %v634, 0.0
    %v645 = vlaneseq
    %v646 = vshrl.u32 %v645, 7
    %v647 = vsub.s32 0, %v646
    %v648 = vrot.slane %v40, %v647
    %v649 = vlaneseq
    %v650 = vshrl.u32 %v649, 7
    %v651 = vsub.s32 1, %v650
    %v652 = vrot.slane %v40, %v651
    %v653 = vlaneseq
    %v654 = vshrl.u32 %v653, 7
    %v655 = vsub.s32 2, %v654
    %v656 = vrot.slane %v40, %v655
    %v657 = vlaneseq
    %v658 = vshrl.u32 %v657, 7
    %v659 = vsub.s32 3, %v658
    %v660 = vrot.slane %v40, %v659
    %v661 = vlaneseq
    %v662 = vshrl.u32 %v661, 7
    %v663 = vsub.s32 4, %v662
    %v664 = vrot.slane %v40, %v663
    %v665 = vlaneseq
    %v666 = vshrl.u32 %v665, 7
    %v667 = vsub.s32 5, %v666
    %v668 = vrot.slane %v40, %v667
    %v675 = vmul.f32 %v638, %v648
    %v676 = vmul.f32 %v639, %v652
    %v677 = vmul.f32 %v640, %v656
    %v678 = vmul.f32 %v641, %v660
    %v679 = vmul.f32 %v642, %v664
    %v680 = vmul.f32 %v643, %v668
    %v681 = vpack.c.bf16 %v675, %v675
    %v682 = vpack.c.bf16 %v676, %v676
    %v683 = vpack.c.bf16 %v677, %v677
    %v684 = vpack.c.bf16 %v678, %v678
    %v685 = vpack.c.bf16 %v679, %v679
    %v686 = vpack.c.bf16 %v680, %v680
    %v693 = vunpack.c.l.b16 %v681
    %v694 = vunpack.c.l.b16 %v682
    %v695 = vunpack.c.l.b16 %v683
    %v696 = vunpack.c.l.b16 %v684
    %v697 = vunpack.c.l.b16 %v685
    %v698 = vunpack.c.l.b16 %v686
    %v699 = vpack.c.b16 %v694, %v693
    %v700 = vpack.c.b16 %v696, %v695
    %v701 = vpack.c.b16 %v698, %v697
    %705 = vst [vmem:[#allocation6] sm:$0xff] %v699
    %706 = vst [vmem:[#allocation6 + $0x8] sm:$0xff] %v700
    %707 = vst [vmem:[#allocation6 + $0x10] sm:$0xff] %v701
    %708 = vst [vmem:[#allocation2] sm:$0xff] 0.0
    %709 = vst [vmem:[#allocation2 + $0x38] sm:$0xff] 0.0
    %710 = vst [vmem:[#allocation2 + $0x8] sm:$0xff] %v675
    %711 = vst [vmem:[#allocation2 + $0x10] sm:$0xff] %v676
    %712 = vst [vmem:[#allocation2 + $0x18] sm:$0xff] %v677
    %713 = vst [vmem:[#allocation2 + $0x20] sm:$0xff] %v678
    %714 = vst [vmem:[#allocation2 + $0x28] sm:$0xff] %v679
    %715 = vst [vmem:[#allocation2 + $0x30] sm:$0xff] %v680
    %v716 = vld [vmem:[#allocation2] sm:$0xff]
    %v717 = vld [vmem:[#allocation2 + $0x8] sm:$0xff]
    %v718 = vld [vmem:[#allocation2 + $0x10] sm:$0xff]
    %v719 = vld [vmem:[#allocation2 + $0x18] sm:$0xff]
    %v720 = vld [vmem:[#allocation2 + $0x20] sm:$0xff]
    %v721 = vld [vmem:[#allocation2 + $0x28] sm:$0xff]
    %v722 = vld [vmem:[#allocation2 + $0x30] sm:$0xff]
    %v723 = vld [vmem:[#allocation2 + $0x8] sm:$0xff]
    %v724 = vld [vmem:[#allocation2 + $0x10] sm:$0xff]
    %v725 = vld [vmem:[#allocation2 + $0x18] sm:$0xff]
    %v726 = vld [vmem:[#allocation2 + $0x20] sm:$0xff]
    %v727 = vld [vmem:[#allocation2 + $0x28] sm:$0xff]
    %v728 = vld [vmem:[#allocation2 + $0x30] sm:$0xff]
    %v729 = vld [vmem:[#allocation2 + $0x38] sm:$0xff]
    %737 = vrot.lane.b32.xlu0 %v716, 127
    %v738 = vpop.permute.xlu0 %737
    %739 = vrot.lane.b32.xlu0 %v717, 127
    %v740 = vpop.permute.xlu0 %739
    %741 = vrot.lane.b32.xlu0 %v718, 127
    %v742 = vpop.permute.xlu0 %741
    %743 = vrot.lane.b32.xlu0 %v719, 127
    %v744 = vpop.permute.xlu0 %743
    %745 = vrot.lane.b32.xlu0 %v720, 127
    %v746 = vpop.permute.xlu0 %745
    %747 = vrot.lane.b32.xlu0 %v721, 127
    %v748 = vpop.permute.xlu0 %747
    %749 = vrot.lane.b32.xlu0 %v722, 127
    %v750 = vpop.permute.xlu0 %749
    %v751 = vsel %vm76, %v738, %v740
    %v752 = vsel %vm76, %v740, %v742
    %v753 = vsel %vm76, %v742, %v744
    %v754 = vsel %vm76, %v744, %v746
    %v755 = vsel %vm76, %v746, %v748
    %v756 = vsel %vm76, %v748, %v750
    %764 = vrot.lane.b32.xlu0 %v716, 126
    %v765 = vpop.permute.xlu0 %764
    %766 = vrot.lane.b32.xlu0 %v717, 126
    %v767 = vpop.permute.xlu0 %766
    %768 = vrot.lane.b32.xlu0 %v718, 126
    %v769 = vpop.permute.xlu0 %768
    %770 = vrot.lane.b32.xlu0 %v719, 126
    %v771 = vpop.permute.xlu0 %770
    %772 = vrot.lane.b32.xlu0 %v720, 126
    %v773 = vpop.permute.xlu0 %772
    %774 = vrot.lane.b32.xlu0 %v721, 126
    %v775 = vpop.permute.xlu0 %774
    %776 = vrot.lane.b32.xlu0 %v722, 126
    %v777 = vpop.permute.xlu0 %776
    %v778 = vsel %vm104, %v765, %v767
    %v779 = vsel %vm104, %v767, %v769
    %v780 = vsel %vm104, %v769, %v771
    %v781 = vsel %vm104, %v771, %v773
    %v782 = vsel %vm104, %v773, %v775
    %v783 = vsel %vm104, %v775, %v777
    %791 = vrot.lane.b32.xlu0 %v716, 110
    %v792 = vpop.permute.xlu0 %791
    %793 = vrot.lane.b32.xlu0 %v717, 110
    %v794 = vpop.permute.xlu0 %793
    %795 = vrot.lane.b32.xlu0 %v718, 110
    %v796 = vpop.permute.xlu0 %795
    %797 = vrot.lane.b32.xlu0 %v719, 110
    %v798 = vpop.permute.xlu0 %797
    %799 = vrot.lane.b32.xlu0 %v720, 110
    %v800 = vpop.permute.xlu0 %799
    %801 = vrot.lane.b32.xlu0 %v721, 110
    %v802 = vpop.permute.xlu0 %801
    %803 = vrot.lane.b32.xlu0 %v722, 110
    %v804 = vpop.permute.xlu0 %803
    %v805 = vsel %vm132, %v792, %v794
    %v806 = vsel %vm132, %v794, %v796
    %v807 = vsel %vm132, %v796, %v798
    %v808 = vsel %vm132, %v798, %v800
    %v809 = vsel %vm132, %v800, %v802
    %v810 = vsel %vm132, %v802, %v804
    %818 = vrot.lane.b32.xlu0 %v717, 109
    %v819 = vpop.permute.xlu0 %818
    %820 = vrot.lane.b32.xlu0 %v718, 109
    %v821 = vpop.permute.xlu0 %820
    %822 = vrot.lane.b32.xlu0 %v719, 109
    %v823 = vpop.permute.xlu0 %822
    %824 = vrot.lane.b32.xlu0 %v720, 109
    %v825 = vpop.permute.xlu0 %824
    %826 = vrot.lane.b32.xlu0 %v721, 109
    %v827 = vpop.permute.xlu0 %826
    %828 = vrot.lane.b32.xlu0 %v722, 109
    %v829 = vpop.permute.xlu0 %828
    %v830 = vsel %vm158, %v819, %v821
    %v831 = vsel %vm158, %v821, %v823
    %v832 = vsel %vm158, %v823, %v825
    %v833 = vsel %vm158, %v825, %v827
    %v834 = vsel %vm158, %v827, %v829
    %849 = vrot.lane.b32.xlu0 %v723, 108
    %v850 = vpop.permute.xlu0 %849
    %851 = vrot.lane.b32.xlu0 %v724, 108
    %v852 = vpop.permute.xlu0 %851
    %853 = vrot.lane.b32.xlu0 %v725, 108
    %v854 = vpop.permute.xlu0 %853
    %855 = vrot.lane.b32.xlu0 %v726, 108
    %v856 = vpop.permute.xlu0 %855
    %857 = vrot.lane.b32.xlu0 %v727, 108
    %v858 = vpop.permute.xlu0 %857
    %859 = vrot.lane.b32.xlu0 %v728, 108
    %v860 = vpop.permute.xlu0 %859
    %861 = vrot.lane.b32.xlu0 %v729, 108
    %v862 = vpop.permute.xlu0 %861
    %v863 = vsel %vm192, %v850, %v852
    %v864 = vsel %vm192, %v852, %v854
    %v865 = vsel %vm192, %v854, %v856
    %v866 = vsel %vm192, %v856, %v858
    %v867 = vsel %vm192, %v858, %v860
    %v868 = vsel %vm192, %v860, %v862
    %876 = vrot.lane.b32.xlu0 %v723, 92
    %v877 = vpop.permute.xlu0 %876
    %878 = vrot.lane.b32.xlu0 %v724, 92
    %v879 = vpop.permute.xlu0 %878
    %880 = vrot.lane.b32.xlu0 %v725, 92
    %v881 = vpop.permute.xlu0 %880
    %882 = vrot.lane.b32.xlu0 %v726, 92
    %v883 = vpop.permute.xlu0 %882
    %884 = vrot.lane.b32.xlu0 %v727, 92
    %v885 = vpop.permute.xlu0 %884
    %886 = vrot.lane.b32.xlu0 %v728, 92
    %v887 = vpop.permute.xlu0 %886
    %888 = vrot.lane.b32.xlu0 %v729, 92
    %v889 = vpop.permute.xlu0 %888
    %v890 = vsel %vm220, %v877, %v879
    %v891 = vsel %vm220, %v879, %v881
    %v892 = vsel %vm220, %v881, %v883
    %v893 = vsel %vm220, %v883, %v885
    %v894 = vsel %vm220, %v885, %v887
    %v895 = vsel %vm220, %v887, %v889
    %903 = vrot.lane.b32.xlu0 %v723, 91
    %v904 = vpop.permute.xlu0 %903
    %905 = vrot.lane.b32.xlu0 %v724, 91
    %v906 = vpop.permute.xlu0 %905
    %907 = vrot.lane.b32.xlu0 %v725, 91
    %v908 = vpop.permute.xlu0 %907
    %909 = vrot.lane.b32.xlu0 %v726, 91
    %v910 = vpop.permute.xlu0 %909
    %911 = vrot.lane.b32.xlu0 %v727, 91
    %v912 = vpop.permute.xlu0 %911
    %913 = vrot.lane.b32.xlu0 %v728, 91
    %v914 = vpop.permute.xlu0 %913
    %915 = vrot.lane.b32.xlu0 %v729, 91
    %v916 = vpop.permute.xlu0 %915
    %v917 = vsel %vm248, %v904, %v906
    %v918 = vsel %vm248, %v906, %v908
    %v919 = vsel %vm248, %v908, %v910
    %v920 = vsel %vm248, %v910, %v912
    %v921 = vsel %vm248, %v912, %v914
    %v922 = vsel %vm248, %v914, %v916
    %930 = vrot.lane.b32.xlu0 %v723, 90
    %v931 = vpop.permute.xlu0 %930
    %932 = vrot.lane.b32.xlu0 %v724, 90
    %v933 = vpop.permute.xlu0 %932
    %934 = vrot.lane.b32.xlu0 %v725, 90
    %v935 = vpop.permute.xlu0 %934
    %936 = vrot.lane.b32.xlu0 %v726, 90
    %v937 = vpop.permute.xlu0 %936
    %938 = vrot.lane.b32.xlu0 %v727, 90
    %v939 = vpop.permute.xlu0 %938
    %940 = vrot.lane.b32.xlu0 %v728, 90
    %v941 = vpop.permute.xlu0 %940
    %942 = vrot.lane.b32.xlu0 %v729, 90
    %v943 = vpop.permute.xlu0 %942
    %v944 = vsel %vm276, %v931, %v933
    %v945 = vsel %vm276, %v933, %v935
    %v946 = vsel %vm276, %v935, %v937
    %v947 = vsel %vm276, %v937, %v939
    %v948 = vsel %vm276, %v939, %v941
    %v949 = vsel %vm276, %v941, %v943
    %v957 = vld [vmem:[%s3] sm:$0xf]
    %v958 = vpack.c.bf16 %v751, %v716
    %v959 = vpack.c.bf16 %v752, %v717
    %v960 = vpack.c.bf16 %v753, %v718
    %v961 = vpack.c.bf16 %v754, %v719
    %v962 = vpack.c.bf16 %v755, %v720
    %v963 = vpack.c.bf16 %v756, %v721
    %v964 = vpack.c.bf16 %v750, %v722
    %v965 = vpack.c.bf16 %v805, %v778
    %v966 = vpack.c.bf16 %v806, %v779
    %v967 = vpack.c.bf16 %v807, %v780
    %v968 = vpack.c.bf16 %v808, %v781
    %v969 = vpack.c.bf16 %v809, %v782
    %v970 = vpack.c.bf16 %v810, %v783
    %v971 = vpack.c.bf16 %v804, %v777
    %v972 = vpack.c.bf16 %v850, %v819
    %v973 = vpack.c.bf16 %v863, %v830
    %v974 = vpack.c.bf16 %v864, %v831
    %v975 = vpack.c.bf16 %v865, %v832
    %v976 = vpack.c.bf16 %v866, %v833
    %v977 = vpack.c.bf16 %v867, %v834
    %v978 = vpack.c.bf16 %v868, %v829
    %v979 = vpack.c.bf16 %v904, %v877
    %v980 = vpack.c.bf16 %v917, %v890
    %v981 = vpack.c.bf16 %v918, %v891
    %v982 = vpack.c.bf16 %v919, %v892
    %v983 = vpack.c.bf16 %v920, %v893
    %v984 = vpack.c.bf16 %v921, %v894
    %v985 = vpack.c.bf16 %v922, %v895
    %v986 = vpack.c.bf16 %v931, %v931
    %v987 = vpack.c.bf16 %v944, %v944
    %v988 = vpack.c.bf16 %v945, %v945
    %v989 = vpack.c.bf16 %v946, %v946
    %v990 = vpack.c.bf16 %v947, %v947
    %v991 = vpack.c.bf16 %v948, %v948
    %v992 = vpack.c.bf16 %v949, %v949
    %v993 = vld [vmem:[%s4] sm:$0xff]
    %995 = vset.pattern.permute.xlu0 0
    %996 = vperm.xlu0 %995, %v993
    %v997 = vpop.permute.xlu0 %996
    %1034 = vrot.lane.b32.xlu0 %v958, 19
    %v1035 = vpop.permute.xlu0 %1034
    %1036 = vrot.lane.b32.xlu0 %v959, 19
    %v1037 = vpop.permute.xlu0 %1036
    %1038 = vrot.lane.b32.xlu0 %v960, 19
    %v1039 = vpop.permute.xlu0 %1038
    %1040 = vrot.lane.b32.xlu0 %v961, 19
    %v1041 = vpop.permute.xlu0 %1040
    %1042 = vrot.lane.b32.xlu0 %v962, 19
    %v1043 = vpop.permute.xlu0 %1042
    %1044 = vrot.lane.b32.xlu0 %v963, 19
    %v1045 = vpop.permute.xlu0 %1044
    %1046 = vrot.lane.b32.xlu0 %v964, 19
    %v1047 = vpop.permute.xlu0 %1046
    %1048 = vrot.lane.b32.xlu0 %v965, 19
    %v1049 = vpop.permute.xlu0 %1048
    %1050 = vrot.lane.b32.xlu0 %v966, 19
    %v1051 = vpop.permute.xlu0 %1050
    %1052 = vrot.lane.b32.xlu0 %v967, 19
    %v1053 = vpop.permute.xlu0 %1052
    %1054 = vrot.lane.b32.xlu0 %v968, 19
    %v1055 = vpop.permute.xlu0 %1054
    %1056 = vrot.lane.b32.xlu0 %v969, 19
    %v1057 = vpop.permute.xlu0 %1056
    %1058 = vrot.lane.b32.xlu0 %v970, 19
    %v1059 = vpop.permute.xlu0 %1058
    %1060 = vrot.lane.b32.xlu0 %v971, 19
    %v1061 = vpop.permute.xlu0 %1060
    %1062 = vrot.lane.b32.xlu0 %v972, 19
    %v1063 = vpop.permute.xlu0 %1062
    %1064 = vrot.lane.b32.xlu0 %v973, 19
    %v1065 = vpop.permute.xlu0 %1064
    %1066 = vrot.lane.b32.xlu0 %v974, 19
    %v1067 = vpop.permute.xlu0 %1066
    %1068 = vrot.lane.b32.xlu0 %v975, 19
    %v1069 = vpop.permute.xlu0 %1068
    %1070 = vrot.lane.b32.xlu0 %v976, 19
    %v1071 = vpop.permute.xlu0 %1070
    %1072 = vrot.lane.b32.xlu0 %v977, 19
    %v1073 = vpop.permute.xlu0 %1072
    %1074 = vrot.lane.b32.xlu0 %v978, 19
    %v1075 = vpop.permute.xlu0 %1074
    %1076 = vrot.lane.b32.xlu0 %v979, 19
    %v1077 = vpop.permute.xlu0 %1076
    %1078 = vrot.lane.b32.xlu0 %v980, 19
    %v1079 = vpop.permute.xlu0 %1078
    %1080 = vrot.lane.b32.xlu0 %v981, 19
    %v1081 = vpop.permute.xlu0 %1080
    %1082 = vrot.lane.b32.xlu0 %v982, 19
    %v1083 = vpop.permute.xlu0 %1082
    %1084 = vrot.lane.b32.xlu0 %v983, 19
    %v1085 = vpop.permute.xlu0 %1084
    %1086 = vrot.lane.b32.xlu0 %v984, 19
    %v1087 = vpop.permute.xlu0 %1086
    %1088 = vrot.lane.b32.xlu0 %v985, 19
    %v1089 = vpop.permute.xlu0 %1088
    %1090 = vrot.lane.b32.xlu0 %v986, 19
    %v1091 = vpop.permute.xlu0 %1090
    %1092 = vrot.lane.b32.xlu0 %v987, 19
    %v1093 = vpop.permute.xlu0 %1092
    %1094 = vrot.lane.b32.xlu0 %v988, 19
    %v1095 = vpop.permute.xlu0 %1094
    %1096 = vrot.lane.b32.xlu0 %v989, 19
    %v1097 = vpop.permute.xlu0 %1096
    %1098 = vrot.lane.b32.xlu0 %v990, 19
    %v1099 = vpop.permute.xlu0 %1098
    %1100 = vrot.lane.b32.xlu0 %v991, 19
    %v1101 = vpop.permute.xlu0 %1100
    %1102 = vrot.lane.b32.xlu0 %v992, 19
    %v1103 = vpop.permute.xlu0 %1102
    %v1104 = vsel %vm437, %v1035, %v1037
    %v1105 = vsel %vm437, %v1037, %v1039
    %v1106 = vsel %vm437, %v1039, %v1041
    %v1107 = vsel %vm437, %v1041, %v1043
    %v1108 = vsel %vm437, %v1043, %v1045
    %v1109 = vsel %vm437, %v1045, %v1047
    %v1110 = vsel %vm437, %v1049, %v1051
    %v1111 = vsel %vm437, %v1051, %v1053
    %v1112 = vsel %vm437, %v1053, %v1055
    %v1113 = vsel %vm437, %v1055, %v1057
    %v1114 = vsel %vm437, %v1057, %v1059
    %v1115 = vsel %vm437, %v1059, %v1061
    %v1116 = vsel %vm437, %v1063, %v1065
    %v1117 = vsel %vm437, %v1065, %v1067
    %v1118 = vsel %vm437, %v1067, %v1069
    %v1119 = vsel %vm437, %v1069, %v1071
    %v1120 = vsel %vm437, %v1071, %v1073
    %v1121 = vsel %vm437, %v1073, %v1075
    %v1122 = vsel %vm437, %v1077, %v1079
    %v1123 = vsel %vm437, %v1079, %v1081
    %v1124 = vsel %vm437, %v1081, %v1083
    %v1125 = vsel %vm437, %v1083, %v1085
    %v1126 = vsel %vm437, %v1085, %v1087
    %v1127 = vsel %vm437, %v1087, %v1089
    %v1128 = vsel %vm437, %v1091, %v1093
    %v1129 = vsel %vm437, %v1093, %v1095
    %v1130 = vsel %vm437, %v1095, %v1097
    %v1131 = vsel %vm437, %v1097, %v1099
    %v1132 = vsel %vm437, %v1099, %v1101
    %v1133 = vsel %vm437, %v1101, %v1103
    %v1159 = vsel %vm492, %v957, 0
    %v1162 = vsel %vm496, %v1128, 0
    %v1165 = vsel %vm496, %v1129, 0
    %v1168 = vsel %vm496, %v1130, 0
    %v1171 = vsel %vm496, %v1131, 0
    %v1174 = vsel %vm496, %v1132, 0
    %v1177 = vsel %vm496, %v1133, 0
    %1179 = vmatprep.subr.bf16.mxu0 %v1105
    %1180 = vmatpush1.bf16.msra.mxu0 %v1104
    %1181 = vmatprep.subr.bf16.mxu0 %v1111
    %1182 = vmatpush1.bf16.msra.mxu0 %v1110
    %1183 = vmatprep.subr.bf16.mxu0 %v1117
    %1184 = vmatpush1.bf16.msra.mxu0 %v1116
    %1185 = vmatprep.subr.bf16.mxu0 %v1123
    %1186 = vmatpush1.bf16.msra.mxu0 %v1122
    %1187 = vmatprep.subr.bf16.mxu0 %v1165
    %1188 = vmatpush1.bf16.msra.mxu0 %v1162
    %1189 = vmatprep.subr.bf16.mxu0 0
    %1190 = vmatpush1.bf16.msra.mxu0 0
    %1191 = vmatprep.subr.bf16.mxu0 0
    %1192 = vmatpush1.bf16.msra.mxu0 0
    %1193 = vmatprep.subr.bf16.mxu0 0
    %1194 = vmatpush1.bf16.msra.mxu0 0
    %1195 = vmatprep.subr.bf16.mxu0 0
    %1196 = vmatpush1.bf16.msra.mxu0 0
    %1197 = vmatprep.subr.bf16.mxu0 0
    %1198 = vmatpush1.bf16.msra.mxu0 0
    %1199 = vmatprep.subr.bf16.mxu0 0
    %1200 = vmatpush1.bf16.msra.mxu0 0
    %1201 = vmatprep.subr.bf16.mxu0 0
    %1202 = vmatpush1.bf16.msra.mxu0 0
    %1203 = vmatprep.subr.bf16.mxu0 0
    %1204 = vmatpush1.bf16.msra.mxu0 0
    %1205 = vmatprep.subr.bf16.mxu0 0
    %1206 = vmatpush1.bf16.msra.mxu0 0
    %1207 = vmatprep.subr.bf16.mxu0 0
    %1208 = vmatpush1.bf16.msra.mxu0 0
    %1209 = vmatprep.subr.bf16.mxu0 0
    %1210 = vmatpush1.bf16.msra.mxu0 0
    %1211 = vmatprep.mubr.bf16.mxu0 0
    %1212 = vmatmul.mubr.bf16.gmra.mrb[0].mxu0 %v1159
    %v1213 = vpop.f32.mrb[0].mxu0
    %v1214 = vadd.f32 %v997, %v1213
    %v1215 = vpop.f32.mrb[0].mxu0
    %v1216 = vadd.f32 %v997, %v1215
    %v1217 = vpop.f32.mrb[0].mxu0
    %v1218 = vpop.f32.mrb[0].mxu0
    %1219 = vdwg.mxu0
    %1220 = vmatprep.subr.bf16.mxu0 %v1107
    %1221 = vmatpush1.bf16.msra.mxu0 %v1106
    %1222 = vmatprep.subr.bf16.mxu0 %v1113
    %1223 = vmatpush1.bf16.msra.mxu0 %v1112
    %1224 = vmatprep.subr.bf16.mxu0 %v1119
    %1225 = vmatpush1.bf16.msra.mxu0 %v1118
    %1226 = vmatprep.subr.bf16.mxu0 %v1125
    %1227 = vmatpush1.bf16.msra.mxu0 %v1124
    %1228 = vmatprep.subr.bf16.mxu0 %v1171
    %1229 = vmatpush1.bf16.msra.mxu0 %v1168
    %1230 = vmatprep.subr.bf16.mxu0 0
    %1231 = vmatpush1.bf16.msra.mxu0 0
    %1232 = vmatprep.subr.bf16.mxu0 0
    %1233 = vmatpush1.bf16.msra.mxu0 0
    %1234 = vmatprep.subr.bf16.mxu0 0
    %1235 = vmatpush1.bf16.msra.mxu0 0
    %1236 = vmatprep.subr.bf16.mxu0 0
    %1237 = vmatpush1.bf16.msra.mxu0 0
    %1238 = vmatprep.subr.bf16.mxu0 0
    %1239 = vmatpush1.bf16.msra.mxu0 0
    %1240 = vmatprep.subr.bf16.mxu0 0
    %1241 = vmatpush1.bf16.msra.mxu0 0
    %1242 = vmatprep.subr.bf16.mxu0 0
    %1243 = vmatpush1.bf16.msra.mxu0 0
    %1244 = vmatprep.subr.bf16.mxu0 0
    %1245 = vmatpush1.bf16.msra.mxu0 0
    %1246 = vmatprep.subr.bf16.mxu0 0
    %1247 = vmatpush1.bf16.msra.mxu0 0
    %1248 = vmatprep.subr.bf16.mxu0 0
    %1249 = vmatpush1.bf16.msra.mxu0 0
    %1250 = vmatprep.subr.bf16.mxu0 0
    %1251 = vmatpush1.bf16.msra.mxu0 0
    %1252 = vmatprep.mubr.bf16.mxu0 0
    %1253 = vmatmul.mubr.bf16.gmra.mrb[0].mxu0 %v1159
    %v1254 = vpop.f32.mrb[0].mxu0
    %v1255 = vadd.f32 %v997, %v1254
    %v1256 = vpop.f32.mrb[0].mxu0
    %v1257 = vadd.f32 %v997, %v1256
    %v1258 = vpop.f32.mrb[0].mxu0
    %v1259 = vpop.f32.mrb[0].mxu0
    %1260 = vdwg.mxu0
    %1261 = vmatprep.subr.bf16.mxu0 %v1109
    %1262 = vmatpush1.bf16.msra.mxu0 %v1108
    %1263 = vmatprep.subr.bf16.mxu0 %v1115
    %1264 = vmatpush1.bf16.msra.mxu0 %v1114
    %1265 = vmatprep.subr.bf16.mxu0 %v1121
    %1266 = vmatpush1.bf16.msra.mxu0 %v1120
    %1267 = vmatprep.subr.bf16.mxu0 %v1127
    %1268 = vmatpush1.bf16.msra.mxu0 %v1126
    %1269 = vmatprep.subr.bf16.mxu0 %v1177
    %1270 = vmatpush1.bf16.msra.mxu0 %v1174
    %1271 = vmatprep.subr.bf16.mxu0 0
    %1272 = vmatpush1.bf16.msra.mxu0 0
    %1273 = vmatprep.subr.bf16.mxu0 0
    %1274 = vmatpush1.bf16.msra.mxu0 0
    %1275 = vmatprep.subr.bf16.mxu0 0
    %1276 = vmatpush1.bf16.msra.mxu0 0
    %1277 = vmatprep.subr.bf16.mxu0 0
    %1278 = vmatpush1.bf16.msra.mxu0 0
    %1279 = vmatprep.subr.bf16.mxu0 0
    %1280 = vmatpush1.bf16.msra.mxu0 0
    %1281 = vmatprep.subr.bf16.mxu0 0
    %1282 = vmatpush1.bf16.msra.mxu0 0
    %1283 = vmatprep.subr.bf16.mxu0 0
    %1284 = vmatpush1.bf16.msra.mxu0 0
    %1285 = vmatprep.subr.bf16.mxu0 0
    %1286 = vmatpush1.bf16.msra.mxu0 0
    %1287 = vmatprep.subr.bf16.mxu0 0
    %1288 = vmatpush1.bf16.msra.mxu0 0
    %1289 = vmatprep.subr.bf16.mxu0 0
    %1290 = vmatpush1.bf16.msra.mxu0 0
    %1291 = vmatprep.subr.bf16.mxu0 0
    %1292 = vmatpush1.bf16.msra.mxu0 0
    %1293 = vmatprep.mubr.bf16.mxu0 0
    %1294 = vmatmul.mubr.bf16.gmra.mrb[0].mxu0 %v1159
    %v1295 = vpop.f32.mrb[0].mxu0
    %v1296 = vadd.f32 %v997, %v1295
    %v1297 = vpop.f32.mrb[0].mxu0
    %v1298 = vadd.f32 %v997, %v1297
    %v1299 = vpop.f32.mrb[0].mxu0
    %v1300 = vpop.f32.mrb[0].mxu0
    %1301 = vdwg.mxu0
    %v1302 = vmax.f32 %v1214, 0.0
    %v1303 = vmax.f32 %v1216, 0.0
    %v1304 = vmax.f32 %v1255, 0.0
    %v1305 = vmax.f32 %v1257, 0.0
    %v1306 = vmax.f32 %v1296, 0.0
    %v1307 = vmax.f32 %v1298, 0.0
    %v1308 = vmul.f32 %v1302, %v648
    %v1309 = vmul.f32 %v1303, %v652
    %v1310 = vmul.f32 %v1304, %v656
    %v1311 = vmul.f32 %v1305, %v660
    %v1312 = vmul.f32 %v1306, %v664
    %v1313 = vmul.f32 %v1307, %v668
    %v1314 = vpack.c.bf16 %v1308, %v1308
    %v1315 = vpack.c.bf16 %v1309, %v1309
    %v1316 = vpack.c.bf16 %v1310, %v1310
    %v1317 = vpack.c.bf16 %v1311, %v1311
    %v1318 = vpack.c.bf16 %v1312, %v1312
    %v1319 = vpack.c.bf16 %v1313, %v1313
    %v1326 = vunpack.c.l.b16 %v1314
    %v1327 = vunpack.c.l.b16 %v1315
    %v1328 = vunpack.c.l.b16 %v1316
    %v1329 = vunpack.c.l.b16 %v1317
    %v1330 = vunpack.c.l.b16 %v1318
    %v1331 = vunpack.c.l.b16 %v1319
    %v1332 = vpack.c.b16 %v1327, %v1326
    %v1333 = vpack.c.b16 %v1329, %v1328
    %v1334 = vpack.c.b16 %v1331, %v1330
    %1338 = vst [vmem:[#allocation7] sm:$0xff] %v1332
    %1339 = vst [vmem:[#allocation7 + $0x8] sm:$0xff] %v1333
    %1340 = vst [vmem:[#allocation7 + $0x10] sm:$0xff] %v1334
    // Predicated region
    $region30: #{tpu_custom_call.1} parent=1 // pred_check
      _
    $region31: #{tpu_custom_call.1} parent=1 // pred_check_branch
      %1342 = sbr.rel (0) target = $region33
    $region32: #{tpu_custom_call.1} parent=1 // pred_region
      %s1344 = ssub.s32 384, 384
      %1345 = vsyncadd [#allocation5], %s1344
      %s1347 = sshll.u32 [#allocation6], 4
      %s1348 = int_to_ptr.vmem [resolvable:$true] %s1347
      %1350 = dma.vmem_to_hbm [thread:$0]  %s1348, 384, %s6, [#allocation5]
    $region33: #{tpu_custom_call.1} parent=1 // pred_fallthru
      _
    // Predicated region
    $region34: #{tpu_custom_call.1} parent=1 // pred_check
      _
    $region35: #{tpu_custom_call.1} parent=1 // pred_check_branch
      %1352 = sbr.rel (0) target = $region37
    $region36: #{tpu_custom_call.1} parent=1 // pred_region
      %s1354 = ssub.s32 384, 384
      %1355 = vsyncadd [#allocation8], %s1354
      %s1357 = sshll.u32 [#allocation7], 4
      %s1358 = int_to_ptr.vmem [resolvable:$true] %s1357
      %1360 = dma.vmem_to_hbm [thread:$0]  %s1358, 384, %s7, [#allocation8]
    $region37: #{tpu_custom_call.1} parent=1 // pred_fallthru
      _
    // Predicated region
    $region38: #{tpu_custom_call.1} parent=1 // pred_check
      _
    $region39: #{tpu_custom_call.1} parent=1 // pred_check_branch
      %1362 = sbr.rel (0) target = $region41
    $region40: #{tpu_custom_call.1} parent=1 // pred_region
      %1363 = dma.done [#allocation5], 384
    $region41: #{tpu_custom_call.1} parent=1 // pred_fallthru
      _
    // Predicated region
    $region42: #{tpu_custom_call.1} parent=1 // pred_check
      _
    $region43: #{tpu_custom_call.1} parent=1 // pred_check_branch
      %1365 = sbr.rel (0) target = $region45
    $region44: #{tpu_custom_call.1} parent=1 // pred_region
      %1366 = dma.done [#allocation8], 384
    $region45: #{tpu_custom_call.1} parent=1 // pred_fallthru
      _
    %1367 = vsyncpa [#allocation4], 1
    %1368 = vsyncpa [#allocation5], 1
    %1369 = vsyncpa [#allocation8], 1

</llo_original>
